<compile_context>
chip_gen: v5e
topology: v5e:2x2
jax: 0.10.0
libtpu: 0.0.40
codegen_flags: <defaults>
</compile_context>

<pallas_src>
import jax
import jax.numpy as jnp
from jax.experimental import pallas as pl
from jax.experimental.pallas import tpu as pltpu

EPS = 1e-5


# ----------------------------------------------------------------------------
# Pallas kernel
# ----------------------------------------------------------------------------
def _make_kernel(has_shortcut: bool):
    def kernel(x_ref, mf_ref, ml_ref, s1_ref, b1_ref, w1_ref, s2_ref, b2_ref,
               w2_ref, f1w_ref, f1b_ref, f2w_ref, f2b_ref, pool_ref, exp_ref,
               *rest):
        if has_shortcut:
            wsc_ref, o_ref = rest
        else:
            (o_ref,) = rest

        x = x_ref[...]                      # (C_in, B) f32, B = NB * L
        mf = mf_ref[...]                    # (1, B): 0 where l == 0, else 1
        ml = ml_ref[...]                    # (1, B): 0 where l == L-1, else 1
        B = x.shape[1]

        # ---- h = relu(bn1(x))  (BN folded to per-channel scale/shift) ----
        h = jnp.maximum(x * s1_ref[...] + b1_ref[...], 0.0)

        # ---- fused 3-tap conv1d (k=3, stride=1, pad=1) as ONE matmul ----
        def conv3(a, w_ref):
            # a: (C, B) f32.  Taps = lane rolls + per-sample boundary masks
            # (zero-padding semantics at each sample's edges).
            prev = pltpu.roll(a, 1, axis=1) * mf       # a[:, p-1], 0 at l==0
            nxt = pltpu.roll(a, B - 1, axis=1) * ml    # a[:, p+1], 0 at l==L-1
            stacked = jnp.concatenate([prev, a, nxt], axis=0)    # (3C, B)
            return jnp.dot(w_ref[...], stacked.astype(w_ref.dtype),
                           preferred_element_type=jnp.float32)

        y1 = conv3(h, w1_ref)                                   # (C_out, B)
        h2 = jnp.maximum(y1 * s2_ref[...] + b2_ref[...], 0.0)   # relu(bn2(y1))
        y2 = conv3(h2, w2_ref)                                  # (C_out, B)

        # ---- SE gate, batched over the NB samples of this block ----
        pooled = jnp.dot(y2, pool_ref[...],
                         preferred_element_type=jnp.float32)    # (C_out, NB)
        g1 = jnp.maximum(
            jnp.dot(f1w_ref[...], pooled,
                    preferred_element_type=jnp.float32) + f1b_ref[...], 0.0)
        g2 = jax.nn.sigmoid(
            jnp.dot(f2w_ref[...], g1,
                    preferred_element_type=jnp.float32) + f2b_ref[...])
        gate = jnp.dot(g2, exp_ref[...],
                       preferred_element_type=jnp.float32)      # (C_out, B)

        out = y2 * gate

        # ---- shortcut ----
        if has_shortcut:
            sc = jnp.dot(wsc_ref[...], h.astype(wsc_ref.dtype),
                         preferred_element_type=jnp.float32)
        else:
            sc = x

        o_ref[...] = (out + sc).astype(o_ref.dtype)             # no final ReLU

    return kernel


# ----------------------------------------------------------------------------
# Host-side wrapper: BN folding, lane-dense layout, pallas_call
# ----------------------------------------------------------------------------
def preact_block_pallas(x, params, stride=1, use_bf16=True):
    if stride != 1:
        # TODO(synk): stride > 1 needs a strided lane gather for conv1; not
        # implemented in this fused lane-dense Pallas path.
        raise NotImplementedError("stride > 1 not supported by the Pallas path")

    N, C_in, L = x.shape
    C_out = params["conv1_w"].shape[0]
    has_shortcut = (stride != 1) or (C_in != C_out)

    # Batch tile: pack NB samples into the lane dim. Prefer NB*L % 128 == 0
    # (lane-dense); otherwise fall back to a single block (== full array).
    NB = N
    for cand in range(1, N + 1):
        if N % cand == 0 and (cand * L) % 128 == 0:
            NB = cand
            break
    B = NB * L
    n_blk = N // NB

    # ---- layout plumbing: channel-major, batch-flattened activations ----
    x2 = jnp.transpose(x, (1, 0, 2)).reshape(C_in, N * L)    # (C_in, N*L)

    pos = jnp.arange(B)
    mfirst = (pos % L != 0).astype(jnp.float32)[None, :]     # (1, B)
    mlast = (pos % L != L - 1).astype(jnp.float32)[None, :]  # (1, B)
    seg = pos // L
    pool = (seg[:, None] == jnp.arange(NB)[None, :]).astype(jnp.float32) / L
    expand = (jnp.arange(NB)[:, None] == seg[None, :]).astype(jnp.float32)

    # ---- fold BN (eval mode running stats) into scale/shift ----
    s1 = params["bn1_g"] / jnp.sqrt(params["bn1_v"] + EPS)
    b1 = params["bn1_b"] - params["bn1_m"] * s1
    s2 = params["bn2_g"] / jnp.sqrt(params["bn2_v"] + EPS)
    b2 = params["bn2_b"] - params["bn2_m"] * s2

    # ---- stack conv taps along the contraction dim: (C_out, 3*C) ----
    wdt = jnp.bfloat16 if use_bf16 else jnp.float32
    w1s = jnp.concatenate([params["conv1_w"][:, :, k] for k in range(3)],
                          axis=1).astype(wdt)                # (C_out, 3*C_in)
    w2s = jnp.concatenate([params["conv2_w"][:, :, k] for k in range(3)],
                          axis=1).astype(wdt)                # (C_out, 3*C_out)
    fc1w, fc1b = params["fc1_w"][:, :, 0], params["fc1_b"][:, None]
    fc2w, fc2b = params["fc2_w"][:, :, 0], params["fc2_b"][:, None]

    inputs = [x2, mfirst, mlast, s1[:, None], b1[:, None], w1s,
              s2[:, None], b2[:, None], w2s, fc1w, fc1b, fc2w, fc2b,
              pool, expand]

    def const_spec(a):
        zeros = (0,) * a.ndim
        return pl.BlockSpec(a.shape, lambda i, _z=zeros: _z)

    in_specs = [pl.BlockSpec((C_in, B), lambda i: (0, i))]
    in_specs += [const_spec(a) for a in inputs[1:]]

    if has_shortcut:
        wsc = params["sc_w"][:, :, 0].astype(wdt)            # (C_out, C_in)
        inputs.append(wsc)
        in_specs.append(const_spec(wsc))

    flops = int(2 * N * L * C_out * (3 * C_in + 3 * C_out + 2
                                     + (C_in if has_shortcut else 0)))
    bytes_accessed = int(sum(a.size * a.dtype.itemsize for a in inputs)
                         + 4 * C_out * N * L)
    cost = pl.CostEstimate(flops=flops, transcendentals=int(N * C_out),
                           bytes_accessed=bytes_accessed)

    out_flat = pl.pallas_call(
        _make_kernel(has_shortcut),
        out_shape=jax.ShapeDtypeStruct((C_out, N * L), x.dtype),
        grid=(n_blk,),
        in_specs=in_specs,
        out_specs=pl.BlockSpec((C_out, B), lambda i: (0, i)),
        compiler_params=pltpu.CompilerParams(
            dimension_semantics=("parallel",),          # batch axis -> 2 TCs on v7x
            vmem_limit_bytes=32 * 1024 * 1024),
        cost_estimate=cost,
    )(*inputs)

    return out_flat.reshape(C_out, N, L).transpose(1, 0, 2)  # back to (N, C, L)


# ----------------------------------------------------------------------------
# Pure-JAX reference (mirrors PyTorch PreActBlock.forward, BN in eval mode)
# ----------------------------------------------------------------------------
def preact_block_ref(x, params, stride=1):
    def conv1d(a, w, s, pad):
        return jax.lax.conv_general_dilated(
            a, w, (s,), [(pad, pad)], dimension_numbers=("NCH", "OIH", "NCH"))

    def bn(a, g, b, m, v):
        inv = g / jnp.sqrt(v + EPS)
        return a * inv[None, :, None] + (b - m * inv)[None, :, None]

    C_in, C_out = x.shape[1], params["conv1_w"].shape[0]
    h = jax.nn.relu(bn(x, params["bn1_g"], params["bn1_b"],
                       params["bn1_m"], params["bn1_v"]))
    if stride != 1 or C_in != C_out:
        sc = conv1d(h, params["sc_w"], stride, 0)
    else:
        sc = x
    out = conv1d(h, params["conv1_w"], stride, 1)
    out = conv1d(jax.nn.relu(bn(out, params["bn2_g"], params["bn2_b"],
                                params["bn2_m"], params["bn2_v"])),
                 params["conv2_w"], 1, 1)
    w = jnp.mean(out, axis=2, keepdims=True)
    w = jax.nn.relu(conv1d(w, params["fc1_w"], 1, 0)
                    + params["fc1_b"][None, :, None])
    w = jax.nn.sigmoid(conv1d(w, params["fc2_w"], 1, 0)
                       + params["fc2_b"][None, :, None])
    return out * w + sc


# ----------------------------------------------------------------------------
def _make_params(key, c_in, c_out):
    ks = jax.random.split(key, 9)
    c_mid = max(1, c_out // 16)

    def bn_params(k, c):
        k0, k1, k2, k3 = jax.random.split(k, 4)
        return (jax.random.normal(k0, (c,), jnp.float32) * 0.1 + 1.0,   # gamma
                jax.random.normal(k1, (c,), jnp.float32) * 0.1,         # beta
                jax.random.normal(k2, (c,), jnp.float32) * 0.1,         # mean
                jax.random.uniform(k3, (c,), jnp.float32,
                                   minval=0.5, maxval=1.5))             # var

    g1, b1, m1, v1 = bn_params(ks[0], c_in)     # bn1 over in_planes
    g2, b2, m2, v2 = bn_params(ks[1], c_out)    # bn2 over planes
    return {
        "conv1_w": jax.random.normal(ks[2], (c_out, c_in, 3), jnp.float32) * 0.1,
        "bn1_g": g1, "bn1_b": b1, "bn1_m": m1, "bn1_v": v1,
        "conv2_w": jax.random.normal(ks[3], (c_out, c_out, 3), jnp.float32) * 0.1,
        "bn2_g": g2, "bn2_b": b2, "bn2_m": m2, "bn2_v": v2,
        "fc1_w": jax.random.normal(ks[4], (c_mid, c_out, 1), jnp.float32) * 0.1,
        "fc1_b": jax.random.normal(ks[5], (c_mid,), jnp.float32) * 0.1,
        "fc2_w": jax.random.normal(ks[6], (c_out, c_mid, 1), jnp.float32) * 0.1,
        "fc2_b": jax.random.normal(ks[7], (c_out,), jnp.float32) * 0.1,
        "sc_w": jax.random.normal(ks[8], (c_out, c_in, 1), jnp.float32) * 0.1,
    }


if __name__ == "__main__":
    N, L = 16, 16
    key = jax.random.PRNGKey(0)
    k_p1, k_p2, k_x1, k_x2 = jax.random.split(key, 4)

    configs = [
        ("conv shortcut (in_planes != planes)", 16, 32, k_p1, k_x1),
        ("identity shortcut", 32, 32, k_p2, k_x2),
    ]

    for name, c_in, c_out, kp, kx in configs:
        params = _make_params(kp, c_in, c_out)
        x = jax.random.normal(kx, (N, c_in, L), jnp.float32)

        out = preact_block_pallas(x, params, stride=1)
        jax.block_until_ready(out)

        ref = preact_block_ref(x, params, stride=1)
        assert out.shape == ref.shape, (out.shape, ref.shape)
        err = float(jnp.max(jnp.abs(out - ref)))
        # bf16 MXU operands (f32 accumulation) => looser tolerance than f32.
        assert jnp.allclose(out, ref, atol=3e-2, rtol=3e-2), \
            f"{name}: max abs err = {err}"

    print("KERNEL_OK")
</pallas_src>

<mosaic_0001>
module attributes {stable_mosaic.version = 11 : i64} {
  func.func @kernel(%arg0: i32, %arg1: memref<16x128xf32, #tpu.memory_space<vmem>>, %arg2: memref<1x128xf32, #tpu.memory_space<vmem>>, %arg3: memref<1x128xf32, #tpu.memory_space<vmem>>, %arg4: memref<16x1xf32, #tpu.memory_space<vmem>>, %arg5: memref<16x1xf32, #tpu.memory_space<vmem>>, %arg6: memref<32x48xbf16, #tpu.memory_space<vmem>>, %arg7: memref<32x1xf32, #tpu.memory_space<vmem>>, %arg8: memref<32x1xf32, #tpu.memory_space<vmem>>, %arg9: memref<32x96xbf16, #tpu.memory_space<vmem>>, %arg10: memref<2x32xf32, #tpu.memory_space<vmem>>, %arg11: memref<2x1xf32, #tpu.memory_space<vmem>>, %arg12: memref<32x2xf32, #tpu.memory_space<vmem>>, %arg13: memref<32x1xf32, #tpu.memory_space<vmem>>, %arg14: memref<128x8xf32, #tpu.memory_space<vmem>>, %arg15: memref<8x128xf32, #tpu.memory_space<vmem>>, %arg16: memref<32x16xbf16, #tpu.memory_space<vmem>>, %arg17: memref<32x128xf32, #tpu.memory_space<vmem>>) attributes {dimension_semantics = [#tpu.dimension_semantics<parallel>], iteration_bounds = array<i64: 2>, scalar_prefetch = 0 : i64, scratch_operands = 0 : i64, tpu.core_type = #tpu.core_type<tc>, window_params = [{transform_indices = @transform_0, window_bounds = array<i64: 16, 128>}, {pipeline_mode = #tpu.pipeline_mode<synchronous>, transform_indices = @transform_1, window_bounds = array<i64: 1, 128>}, {pipeline_mode = #tpu.pipeline_mode<synchronous>, transform_indices = @transform_2, window_bounds = array<i64: 1, 128>}, {pipeline_mode = #tpu.pipeline_mode<synchronous>, transform_indices = @transform_3, window_bounds = array<i64: 16, 1>}, {pipeline_mode = #tpu.pipeline_mode<synchronous>, transform_indices = @transform_4, window_bounds = array<i64: 16, 1>}, {pipeline_mode = #tpu.pipeline_mode<synchronous>, transform_indices = @transform_5, window_bounds = array<i64: 32, 48>}, {pipeline_mode = #tpu.pipeline_mode<synchronous>, transform_indices = @transform_6, window_bounds = array<i64: 32, 1>}, {pipeline_mode = #tpu.pipeline_mode<synchronous>, transform_indices = @transform_7, window_bounds = array<i64: 32, 1>}, {pipeline_mode = #tpu.pipeline_mode<synchronous>, transform_indices = @transform_8, window_bounds = array<i64: 32, 96>}, {pipeline_mode = #tpu.pipeline_mode<synchronous>, transform_indices = @transform_9, window_bounds = array<i64: 2, 32>}, {pipeline_mode = #tpu.pipeline_mode<synchronous>, transform_indices = @transform_10, window_bounds = array<i64: 2, 1>}, {pipeline_mode = #tpu.pipeline_mode<synchronous>, transform_indices = @transform_11, window_bounds = array<i64: 32, 2>}, {pipeline_mode = #tpu.pipeline_mode<synchronous>, transform_indices = @transform_12, window_bounds = array<i64: 32, 1>}, {pipeline_mode = #tpu.pipeline_mode<synchronous>, transform_indices = @transform_13, window_bounds = array<i64: 128, 8>}, {pipeline_mode = #tpu.pipeline_mode<synchronous>, transform_indices = @transform_14, window_bounds = array<i64: 8, 128>}, {pipeline_mode = #tpu.pipeline_mode<synchronous>, transform_indices = @transform_15, window_bounds = array<i64: 32, 16>}, {transform_indices = @transform_16, window_bounds = array<i64: 32, 128>}]} {
    %c0 = arith.constant 0 : index
    %c0_0 = arith.constant 0 : index
    %0 = vector.load %arg1[%c0, %c0_0] : memref<16x128xf32, #tpu.memory_space<vmem>>, vector<16x128xf32>
    %c0_1 = arith.constant 0 : index
    %c0_2 = arith.constant 0 : index
    %1 = vector.load %arg2[%c0_1, %c0_2] : memref<1x128xf32, #tpu.memory_space<vmem>>, vector<1x128xf32>
    %c0_3 = arith.constant 0 : index
    %c0_4 = arith.constant 0 : index
    %2 = vector.load %arg3[%c0_3, %c0_4] : memref<1x128xf32, #tpu.memory_space<vmem>>, vector<1x128xf32>
    %c0_5 = arith.constant 0 : index
    %c0_6 = arith.constant 0 : index
    %3 = vector.load %arg4[%c0_5, %c0_6] : memref<16x1xf32, #tpu.memory_space<vmem>>, vector<16x1xf32>
    %4 = vector.broadcast %3 : vector<16x1xf32> to vector<16x128xf32>
    %5 = arith.mulf %0, %4 : vector<16x128xf32>
    %c0_7 = arith.constant 0 : index
    %c0_8 = arith.constant 0 : index
    %6 = vector.load %arg5[%c0_7, %c0_8] : memref<16x1xf32, #tpu.memory_space<vmem>>, vector<16x1xf32>
    %7 = vector.broadcast %6 : vector<16x1xf32> to vector<16x128xf32>
    %8 = arith.addf %5, %7 : vector<16x128xf32>
    %cst = arith.constant 0.000000e+00 : f32
    %9 = vector.broadcast %cst : f32 to vector<16x128xf32>
    %10 = arith.maximumf %8, %9 : vector<16x128xf32>
    %c1_i32 = arith.constant 1 : i32
    %11 = tpu.dynamic_rotate %10 by %c1_i32 dim 1 : vector<16x128xf32>, i32 -> vector<16x128xf32>
    %12 = vector.broadcast %1 : vector<1x128xf32> to vector<16x128xf32>
    %13 = arith.mulf %11, %12 : vector<16x128xf32>
    %c127_i32 = arith.constant 127 : i32
    %14 = tpu.dynamic_rotate %10 by %c127_i32 dim 1 : vector<16x128xf32>, i32 -> vector<16x128xf32>
    %15 = vector.broadcast %2 : vector<1x128xf32> to vector<16x128xf32>
    %16 = arith.mulf %14, %15 : vector<16x128xf32>
    %17 = tpu.concatenate %13, %10, %16 in 0 : vector<16x128xf32>, vector<16x128xf32>, vector<16x128xf32> -> vector<48x128xf32>
    %c0_9 = arith.constant 0 : index
    %c0_10 = arith.constant 0 : index
    %18 = vector.load %arg6[%c0_9, %c0_10] : memref<32x48xbf16, #tpu.memory_space<vmem>>, vector<32x48xbf16>
    %19 = arith.truncf %17 : vector<48x128xf32> to vector<48x128xbf16>
    %cst_11 = arith.constant dense<0.000000e+00> : vector<32x128xf32>
    %20 = tpu.matmul %18, %19, %cst_11 {dimension_numbers = #tpu.dot_dimension_numbers<[1], [0], [0], [1], [0, 0, 1, 1], [], []>} : vector<32x48xbf16>, vector<48x128xbf16>, vector<32x128xf32> -> vector<32x128xf32>
    %c0_12 = arith.constant 0 : index
    %c0_13 = arith.constant 0 : index
    %21 = vector.load %arg7[%c0_12, %c0_13] : memref<32x1xf32, #tpu.memory_space<vmem>>, vector<32x1xf32>
    %22 = vector.broadcast %21 : vector<32x1xf32> to vector<32x128xf32>
    %23 = arith.mulf %20, %22 : vector<32x128xf32>
    %c0_14 = arith.constant 0 : index
    %c0_15 = arith.constant 0 : index
    %24 = vector.load %arg8[%c0_14, %c0_15] : memref<32x1xf32, #tpu.memory_space<vmem>>, vector<32x1xf32>
    %25 = vector.broadcast %24 : vector<32x1xf32> to vector<32x128xf32>
    %26 = arith.addf %23, %25 : vector<32x128xf32>
    %cst_16 = arith.constant 0.000000e+00 : f32
    %27 = vector.broadcast %cst_16 : f32 to vector<32x128xf32>
    %28 = arith.maximumf %26, %27 : vector<32x128xf32>
    %c1_i32_17 = arith.constant 1 : i32
    %29 = tpu.dynamic_rotate %28 by %c1_i32_17 dim 1 : vector<32x128xf32>, i32 -> vector<32x128xf32>
    %30 = vector.broadcast %1 : vector<1x128xf32> to vector<32x128xf32>
    %31 = arith.mulf %29, %30 : vector<32x128xf32>
    %c127_i32_18 = arith.constant 127 : i32
    %32 = tpu.dynamic_rotate %28 by %c127_i32_18 dim 1 : vector<32x128xf32>, i32 -> vector<32x128xf32>
    %33 = vector.broadcast %2 : vector<1x128xf32> to vector<32x128xf32>
    %34 = arith.mulf %32, %33 : vector<32x128xf32>
    %35 = tpu.concatenate %31, %28, %34 in 0 : vector<32x128xf32>, vector<32x128xf32>, vector<32x128xf32> -> vector<96x128xf32>
    %c0_19 = arith.constant 0 : index
    %c0_20 = arith.constant 0 : index
    %36 = vector.load %arg9[%c0_19, %c0_20] : memref<32x96xbf16, #tpu.memory_space<vmem>>, vector<32x96xbf16>
    %37 = arith.truncf %35 : vector<96x128xf32> to vector<96x128xbf16>
    %cst_21 = arith.constant dense<0.000000e+00> : vector<32x128xf32>
    %38 = tpu.matmul %36, %37, %cst_21 {dimension_numbers = #tpu.dot_dimension_numbers<[1], [0], [0], [1], [0, 0, 1, 1], [], []>} : vector<32x96xbf16>, vector<96x128xbf16>, vector<32x128xf32> -> vector<32x128xf32>
    %c0_22 = arith.constant 0 : index
    %c0_23 = arith.constant 0 : index
    %39 = vector.load %arg14[%c0_22, %c0_23] : memref<128x8xf32, #tpu.memory_space<vmem>>, vector<128x8xf32>
    %cst_24 = arith.constant dense<0.000000e+00> : vector<32x8xf32>
    %40 = tpu.matmul %38, %39, %cst_24 {dimension_numbers = #tpu.dot_dimension_numbers<[1], [0], [0], [1], [0, 0, 1, 1], [], []>} : vector<32x128xf32>, vector<128x8xf32>, vector<32x8xf32> -> vector<32x8xf32>
    %c0_25 = arith.constant 0 : index
    %c0_26 = arith.constant 0 : index
    %41 = vector.load %arg10[%c0_25, %c0_26] : memref<2x32xf32, #tpu.memory_space<vmem>>, vector<2x32xf32>
    %cst_27 = arith.constant dense<0.000000e+00> : vector<2x8xf32>
    %42 = tpu.matmul %41, %40, %cst_27 {dimension_numbers = #tpu.dot_dimension_numbers<[1], [0], [0], [1], [0, 0, 1, 1], [], []>} : vector<2x32xf32>, vector<32x8xf32>, vector<2x8xf32> -> vector<2x8xf32>
    %c0_28 = arith.constant 0 : index
    %c0_29 = arith.constant 0 : index
    %43 = vector.load %arg11[%c0_28, %c0_29] : memref<2x1xf32, #tpu.memory_space<vmem>>, vector<2x1xf32>
    %44 = vector.broadcast %43 : vector<2x1xf32> to vector<2x8xf32>
    %45 = arith.addf %42, %44 : vector<2x8xf32>
    %cst_30 = arith.constant 0.000000e+00 : f32
    %46 = vector.broadcast %cst_30 : f32 to vector<2x8xf32>
    %47 = arith.maximumf %45, %46 : vector<2x8xf32>
    %c0_31 = arith.constant 0 : index
    %c0_32 = arith.constant 0 : index
    %48 = vector.load %arg12[%c0_31, %c0_32] : memref<32x2xf32, #tpu.memory_space<vmem>>, vector<32x2xf32>
    %cst_33 = arith.constant dense<0.000000e+00> : vector<32x8xf32>
    %49 = tpu.matmul %48, %47, %cst_33 {dimension_numbers = #tpu.dot_dimension_numbers<[1], [0], [0], [1], [0, 0, 1, 1], [], []>} : vector<32x2xf32>, vector<2x8xf32>, vector<32x8xf32> -> vector<32x8xf32>
    %c0_34 = arith.constant 0 : index
    %c0_35 = arith.constant 0 : index
    %50 = vector.load %arg13[%c0_34, %c0_35] : memref<32x1xf32, #tpu.memory_space<vmem>>, vector<32x1xf32>
    %51 = vector.broadcast %50 : vector<32x1xf32> to vector<32x8xf32>
    %52 = arith.addf %49, %51 : vector<32x8xf32>
    %53 = arith.negf %52 : vector<32x8xf32>
    %54 = math.exp %53 : vector<32x8xf32>
    %cst_36 = arith.constant 1.000000e+00 : f32
    %55 = vector.broadcast %cst_36 : f32 to vector<32x8xf32>
    %56 = arith.addf %55, %54 : vector<32x8xf32>
    %57 = arith.divf %55, %56 : vector<32x8xf32>
    %c0_37 = arith.constant 0 : index
    %c0_38 = arith.constant 0 : index
    %58 = vector.load %arg15[%c0_37, %c0_38] : memref<8x128xf32, #tpu.memory_space<vmem>>, vector<8x128xf32>
    %cst_39 = arith.constant dense<0.000000e+00> : vector<32x128xf32>
    %59 = tpu.matmul %57, %58, %cst_39 {dimension_numbers = #tpu.dot_dimension_numbers<[1], [0], [0], [1], [0, 0, 1, 1], [], []>} : vector<32x8xf32>, vector<8x128xf32>, vector<32x128xf32> -> vector<32x128xf32>
    %60 = arith.mulf %38, %59 : vector<32x128xf32>
    %c0_40 = arith.constant 0 : index
    %c0_41 = arith.constant 0 : index
    %61 = vector.load %arg16[%c0_40, %c0_41] : memref<32x16xbf16, #tpu.memory_space<vmem>>, vector<32x16xbf16>
    %62 = arith.truncf %10 : vector<16x128xf32> to vector<16x128xbf16>
    %cst_42 = arith.constant dense<0.000000e+00> : vector<32x128xf32>
    %63 = tpu.matmul %61, %62, %cst_42 {dimension_numbers = #tpu.dot_dimension_numbers<[1], [0], [0], [1], [0, 0, 1, 1], [], []>} : vector<32x16xbf16>, vector<16x128xbf16>, vector<32x128xf32> -> vector<32x128xf32>
    %64 = arith.addf %60, %63 : vector<32x128xf32>
    %c0_43 = arith.constant 0 : index
    %c0_44 = arith.constant 0 : index
    %65 = vector.load %arg17[%c0_43, %c0_44] : memref<32x128xf32, #tpu.memory_space<vmem>>, vector<32x128xf32>
    tpu.vector_store %arg17[%c0_43, %c0_44], %64 {strides = array<i32>} : memref<32x128xf32, #tpu.memory_space<vmem>>, vector<32x128xf32>,
    return
  }
  func.func @transform_0(%arg0: i32) -> (i32, i32) {
    %c0_i32 = arith.constant 0 : i32
    %c0_i32_0 = arith.constant 0 : i32
    return %c0_i32, %arg0 : i32, i32
  }
  func.func @transform_1(%arg0: i32) -> (i32, i32) {
    %c0_i32 = arith.constant 0 : i32
    %c0_i32_0 = arith.constant 0 : i32
    %c0_i32_1 = arith.constant 0 : i32
    return %c0_i32, %c0_i32_0 : i32, i32
  }
  func.func @transform_2(%arg0: i32) -> (i32, i32) {
    %c0_i32 = arith.constant 0 : i32
    %c0_i32_0 = arith.constant 0 : i32
    %c0_i32_1 = arith.constant 0 : i32
    return %c0_i32, %c0_i32_0 : i32, i32
  }
  func.func @transform_3(%arg0: i32) -> (i32, i32) {
    %c0_i32 = arith.constant 0 : i32
    %c0_i32_0 = arith.constant 0 : i32
    %c0_i32_1 = arith.constant 0 : i32
    return %c0_i32, %c0_i32_0 : i32, i32
  }
  func.func @transform_4(%arg0: i32) -> (i32, i32) {
    %c0_i32 = arith.constant 0 : i32
    %c0_i32_0 = arith.constant 0 : i32
    %c0_i32_1 = arith.constant 0 : i32
    return %c0_i32, %c0_i32_0 : i32, i32
  }
  func.func @transform_5(%arg0: i32) -> (i32, i32) {
    %c0_i32 = arith.constant 0 : i32
    %c0_i32_0 = arith.constant 0 : i32
    %c0_i32_1 = arith.constant 0 : i32
    return %c0_i32, %c0_i32_0 : i32, i32
  }
  func.func @transform_6(%arg0: i32) -> (i32, i32) {
    %c0_i32 = arith.constant 0 : i32
    %c0_i32_0 = arith.constant 0 : i32
    %c0_i32_1 = arith.constant 0 : i32
    return %c0_i32, %c0_i32_0 : i32, i32
  }
  func.func @transform_7(%arg0: i32) -> (i32, i32) {
    %c0_i32 = arith.constant 0 : i32
    %c0_i32_0 = arith.constant 0 : i32
    %c0_i32_1 = arith.constant 0 : i32
    return %c0_i32, %c0_i32_0 : i32, i32
  }
  func.func @transform_8(%arg0: i32) -> (i32, i32) {
    %c0_i32 = arith.constant 0 : i32
    %c0_i32_0 = arith.constant 0 : i32
    %c0_i32_1 = arith.constant 0 : i32
    return %c0_i32, %c0_i32_0 : i32, i32
  }
  func.func @transform_9(%arg0: i32) -> (i32, i32) {
    %c0_i32 = arith.constant 0 : i32
    %c0_i32_0 = arith.constant 0 : i32
    %c0_i32_1 = arith.constant 0 : i32
    return %c0_i32, %c0_i32_0 : i32, i32
  }
  func.func @transform_10(%arg0: i32) -> (i32, i32) {
    %c0_i32 = arith.constant 0 : i32
    %c0_i32_0 = arith.constant 0 : i32
    %c0_i32_1 = arith.constant 0 : i32
    return %c0_i32, %c0_i32_0 : i32, i32
  }
  func.func @transform_11(%arg0: i32) -> (i32, i32) {
    %c0_i32 = arith.constant 0 : i32
    %c0_i32_0 = arith.constant 0 : i32
    %c0_i32_1 = arith.constant 0 : i32
    return %c0_i32, %c0_i32_0 : i32, i32
  }
  func.func @transform_12(%arg0: i32) -> (i32, i32) {
    %c0_i32 = arith.constant 0 : i32
    %c0_i32_0 = arith.constant 0 : i32
    %c0_i32_1 = arith.constant 0 : i32
    return %c0_i32, %c0_i32_0 : i32, i32
  }
  func.func @transform_13(%arg0: i32) -> (i32, i32) {
    %c0_i32 = arith.constant 0 : i32
    %c0_i32_0 = arith.constant 0 : i32
    %c0_i32_1 = arith.constant 0 : i32
    return %c0_i32, %c0_i32_0 : i32, i32
  }
  func.func @transform_14(%arg0: i32) -> (i32, i32) {
    %c0_i32 = arith.constant 0 : i32
    %c0_i32_0 = arith.constant 0 : i32
    %c0_i32_1 = arith.constant 0 : i32
    return %c0_i32, %c0_i32_0 : i32, i32
  }
  func.func @transform_15(%arg0: i32) -> (i32, i32) {
    %c0_i32 = arith.constant 0 : i32
    %c0_i32_0 = arith.constant 0 : i32
    %c0_i32_1 = arith.constant 0 : i32
    return %c0_i32, %c0_i32_0 : i32, i32
  }
  func.func @transform_16(%arg0: i32) -> (i32, i32) {
    %c0_i32 = arith.constant 0 : i32
    %c0_i32_0 = arith.constant 0 : i32
    return %c0_i32, %arg0 : i32, i32
  }
}

</mosaic_0001>

<llo_original>
// kernel: tpu_custom_call.1
$region0: #{tpu_custom_call.1}
  #allocation0 [shape = 'u32[]', space=smem, size = 0x4, offset = 0x4, fixed_abs, tag = 'smem constant byte address 0x4 - core index']
  #allocation1 [shape = 'u32[72,128]{1,0:T(1,128)}', space=vmem, size = 0x9000, scoped, tag = 'internal scratch']
  %s0 = inlined_call_operand.vmem [shape: f32[16,256], index: 0, kind: input, shape index: {}]
  %s1 = inlined_call_operand.vmem [shape: f32[1,128], index: 1, kind: input, shape index: {}]
  %s2 = inlined_call_operand.vmem [shape: f32[1,128], index: 2, kind: input, shape index: {}]
  %s3 = inlined_call_operand.vmem [shape: f32[16,1], index: 3, kind: input, shape index: {}]
  %s4 = inlined_call_operand.vmem [shape: f32[16,1], index: 4, kind: input, shape index: {}]
  %s5 = inlined_call_operand.vmem [shape: bf16[32,48], index: 5, kind: input, shape index: {}]
  %s6 = inlined_call_operand.vmem [shape: f32[32,1], index: 6, kind: input, shape index: {}]
  %s7 = inlined_call_operand.vmem [shape: f32[32,1], index: 7, kind: input, shape index: {}]
  %s8 = inlined_call_operand.vmem [shape: bf16[32,96], index: 8, kind: input, shape index: {}]
  %s9 = inlined_call_operand.vmem [shape: f32[2,32], index: 9, kind: input, shape index: {}]
  %s10 = inlined_call_operand.vmem [shape: f32[2,1], index: 10, kind: input, shape index: {}]
  %s11 = inlined_call_operand.vmem [shape: f32[32,2], index: 11, kind: input, shape index: {}]
  %s12 = inlined_call_operand.vmem [shape: f32[32,1], index: 12, kind: input, shape index: {}]
  %s13 = inlined_call_operand.vmem [shape: f32[128,8], index: 13, kind: input, shape index: {}]
  %s14 = inlined_call_operand.vmem [shape: f32[8,128], index: 14, kind: input, shape index: {}]
  %s15 = inlined_call_operand.vmem [shape: bf16[32,16], index: 15, kind: input, shape index: {}]
  %s16 = inlined_call_operand.hbm [shape: f32[32,256], index: 16, kind: output, shape index: {}]
  %s17 = sld [smem:[#allocation0]]
  $region135: #{tpu_custom_call.1} parent=0
    _
  %s19 = ssub.s32 1, %s17
  %s20 = scalar_select 0, %s19, %s17
  $region1: #{tpu_custom_call.1} parent=0
    #allocation2 [shape = 'u8[16384]{0}', space=vmem, size = 0x4000, scoped, tag = 'input window, operand 0']
    #allocation3 [shape = 'u8[32768]{0}', space=vmem, size = 0x8000, scoped, tag = 'output window, operand 0']
    #allocation4 [shape = 's32[2]{0}', space=sflag, size = 0x8, scoped, tag = 'scoped memory for tpu_custom_call.1']
    %21 = vsyncpa [#allocation4], 0
    %s22 = scalar_lea.sflag [#allocation4], 1
    %23 = vsyncpa %s22, 0
    loop: start=0, step=1, limit=4
    $region2: #{tpu_custom_call.1} parent=1 // loop_pre_header
      _
    $region3: #{tpu_custom_call.1} parent=1 // loop_header
      %s25 = sphi 0, %s29
      %p26 = scmp.ge.s32.totalorder %s25, 4
      %s35 = sphi 0, %s37
      %s38 = sphi 0, %s35
      %s39 = sphi 0, %s38
      %s55 = sphi 0, %s39
      %s59 = sphi 0, %s59
      %s61 = sphi 0, %s59
      %s62 = sphi 0, %s61
      %s76 = sphi 0, %s62
      %s80 = sphi 0, %s80
      %s82 = sphi 0, %s80
      %s83 = sphi 0, %s82
      %s97 = sphi 0, %s83
      %s101 = sphi 0, %s101
      %s103 = sphi 0, %s101
      %s104 = sphi 0, %s103
      %s118 = sphi 0, %s104
      %s122 = sphi 0, %s122
      %s124 = sphi 0, %s122
      %s125 = sphi 0, %s124
      %s139 = sphi 0, %s125
      %s143 = sphi 0, %s143
      %s145 = sphi 0, %s143
      %s146 = sphi 0, %s145
      %s160 = sphi 0, %s146
      %s164 = sphi 0, %s164
      %s166 = sphi 0, %s164
      %s167 = sphi 0, %s166
      %s181 = sphi 0, %s167
      %s185 = sphi 0, %s185
      %s187 = sphi 0, %s185
      %s188 = sphi 0, %s187
      %s202 = sphi 0, %s188
      %s206 = sphi 0, %s206
      %s208 = sphi 0, %s206
      %s209 = sphi 0, %s208
      %s223 = sphi 0, %s209
      %s227 = sphi 0, %s227
      %s229 = sphi 0, %s227
      %s230 = sphi 0, %s229
      %s244 = sphi 0, %s230
      %s248 = sphi 0, %s248
      %s250 = sphi 0, %s248
      %s251 = sphi 0, %s250
      %s265 = sphi 0, %s251
      %s269 = sphi 0, %s269
      %s271 = sphi 0, %s269
      %s272 = sphi 0, %s271
      %s286 = sphi 0, %s272
      %s290 = sphi 0, %s290
      %s292 = sphi 0, %s290
      %s293 = sphi 0, %s292
      %s307 = sphi 0, %s293
      %s311 = sphi 0, %s311
      %s313 = sphi 0, %s311
      %s314 = sphi 0, %s313
      %s328 = sphi 0, %s314
      %s332 = sphi 0, %s332
      %s334 = sphi 0, %s332
      %s335 = sphi 0, %s334
      %s349 = sphi 0, %s335
      %s353 = sphi 0, %s353
      %s355 = sphi 0, %s353
      %s356 = sphi 0, %s355
      %s370 = sphi 0, %s356
      %s376 = sphi 0, %s378
      %s379 = sphi 0, %s376
      %s380 = sphi 0, %s379
      %s396 = sphi 0, %s380
    $region4: #{tpu_custom_call.1} parent=1 // loop_header_branch
      %28 = sbr.rel (%p26) target = $region8
    $region5: #{tpu_custom_call.1} parent=1 // loop_body
      %s30 = ssub.s32 %s25, 1
      %s31 = ssub.s32 %s25, 2
      %s32 = sadd.s32 %s25, 1
      %s33 = ssub.s32 %s25, %s32
      %p34 = scmp.eq.s32.totalorder %s33, 0
      %s36 = sadd.s32 %s35, 1
      %s37 = scalar_select %p34, %s35, %s36
      %p40 = pneg %p34
      %p41 = scmp.eq.s32.totalorder %s25, 1
      %p42 = por %p40, %p41
      %p43 = scmp.ne.s32.totalorder %s35, %s38
      %p44 = scmp.eq.s32.totalorder %s25, 0
      %p45 = por %p43, %p44
      %p46 = scmp.ne.s32.totalorder %s35, %s38
      %p47 = scmp.eq.s32.totalorder %s30, 1
      %p48 = por %p46, %p47
      %p49 = scmp.ne.s32.totalorder %s38, %s39
      %p50 = scmp.eq.s32.totalorder %s30, 0
      %p51 = por %p49, %p50
      %p52 = scmp.ne.s32.totalorder %s38, %s39
      %p53 = scmp.eq.s32.totalorder %s31, 1
      %p54 = por %p52, %p53
      %p56 = scmp.ne.s32.totalorder %s39, %s55
      %p57 = scmp.eq.s32.totalorder %s31, 0
      %p58 = por %p56, %p57
      %s60 = sadd.s32 %s59, 1
      %p63 = scmp.eq.s32.totalorder %s25, 1
      %p64 = scmp.ne.s32.totalorder %s59, %s61
      %p65 = scmp.eq.s32.totalorder %s25, 0
      %p66 = por %p64, %p65
      %p67 = scmp.ne.s32.totalorder %s59, %s61
      %p68 = scmp.eq.s32.totalorder %s30, 1
      %p69 = por %p67, %p68
      %p70 = scmp.ne.s32.totalorder %s61, %s62
      %p71 = scmp.eq.s32.totalorder %s30, 0
      %p72 = por %p70, %p71
      %p73 = scmp.ne.s32.totalorder %s61, %s62
      %p74 = scmp.eq.s32.totalorder %s31, 1
      %p75 = por %p73, %p74
      %p77 = scmp.ne.s32.totalorder %s62, %s76
      %p78 = scmp.eq.s32.totalorder %s31, 0
      %p79 = por %p77, %p78
      %s81 = sadd.s32 %s80, 1
      %p84 = scmp.eq.s32.totalorder %s25, 1
      %p85 = scmp.ne.s32.totalorder %s80, %s82
      %p86 = scmp.eq.s32.totalorder %s25, 0
      %p87 = por %p85, %p86
      %p88 = scmp.ne.s32.totalorder %s80, %s82
      %p89 = scmp.eq.s32.totalorder %s30, 1
      %p90 = por %p88, %p89
      %p91 = scmp.ne.s32.totalorder %s82, %s83
      %p92 = scmp.eq.s32.totalorder %s30, 0
      %p93 = por %p91, %p92
      %p94 = scmp.ne.s32.totalorder %s82, %s83
      %p95 = scmp.eq.s32.totalorder %s31, 1
      %p96 = por %p94, %p95
      %p98 = scmp.ne.s32.totalorder %s83, %s97
      %p99 = scmp.eq.s32.totalorder %s31, 0
      %p100 = por %p98, %p99
      %s102 = sadd.s32 %s101, 1
      %p105 = scmp.eq.s32.totalorder %s25, 1
      %p106 = scmp.ne.s32.totalorder %s101, %s103
      %p107 = scmp.eq.s32.totalorder %s25, 0
      %p108 = por %p106, %p107
      %p109 = scmp.ne.s32.totalorder %s101, %s103
      %p110 = scmp.eq.s32.totalorder %s30, 1
      %p111 = por %p109, %p110
      %p112 = scmp.ne.s32.totalorder %s103, %s104
      %p113 = scmp.eq.s32.totalorder %s30, 0
      %p114 = por %p112, %p113
      %p115 = scmp.ne.s32.totalorder %s103, %s104
      %p116 = scmp.eq.s32.totalorder %s31, 1
      %p117 = por %p115, %p116
      %p119 = scmp.ne.s32.totalorder %s104, %s118
      %p120 = scmp.eq.s32.totalorder %s31, 0
      %p121 = por %p119, %p120
      %s123 = sadd.s32 %s122, 1
      %p126 = scmp.eq.s32.totalorder %s25, 1
      %p127 = scmp.ne.s32.totalorder %s122, %s124
      %p128 = scmp.eq.s32.totalorder %s25, 0
      %p129 = por %p127, %p128
      %p130 = scmp.ne.s32.totalorder %s122, %s124
      %p131 = scmp.eq.s32.totalorder %s30, 1
      %p132 = por %p130, %p131
      %p133 = scmp.ne.s32.totalorder %s124, %s125
      %p134 = scmp.eq.s32.totalorder %s30, 0
      %p135 = por %p133, %p134
      %p136 = scmp.ne.s32.totalorder %s124, %s125
      %p137 = scmp.eq.s32.totalorder %s31, 1
      %p138 = por %p136, %p137
      %p140 = scmp.ne.s32.totalorder %s125, %s139
      %p141 = scmp.eq.s32.totalorder %s31, 0
      %p142 = por %p140, %p141
      %s144 = sadd.s32 %s143, 1
      %p147 = scmp.eq.s32.totalorder %s25, 1
      %p148 = scmp.ne.s32.totalorder %s143, %s145
      %p149 = scmp.eq.s32.totalorder %s25, 0
      %p150 = por %p148, %p149
      %p151 = scmp.ne.s32.totalorder %s143, %s145
      %p152 = scmp.eq.s32.totalorder %s30, 1
      %p153 = por %p151, %p152
      %p154 = scmp.ne.s32.totalorder %s145, %s146
      %p155 = scmp.eq.s32.totalorder %s30, 0
      %p156 = por %p154, %p155
      %p157 = scmp.ne.s32.totalorder %s145, %s146
      %p158 = scmp.eq.s32.totalorder %s31, 1
      %p159 = por %p157, %p158
      %p161 = scmp.ne.s32.totalorder %s146, %s160
      %p162 = scmp.eq.s32.totalorder %s31, 0
      %p163 = por %p161, %p162
      %s165 = sadd.s32 %s164, 1
      %p168 = scmp.eq.s32.totalorder %s25, 1
      %p169 = scmp.ne.s32.totalorder %s164, %s166
      %p170 = scmp.eq.s32.totalorder %s25, 0
      %p171 = por %p169, %p170
      %p172 = scmp.ne.s32.totalorder %s164, %s166
      %p173 = scmp.eq.s32.totalorder %s30, 1
      %p174 = por %p172, %p173
      %p175 = scmp.ne.s32.totalorder %s166, %s167
      %p176 = scmp.eq.s32.totalorder %s30, 0
      %p177 = por %p175, %p176
      %p178 = scmp.ne.s32.totalorder %s166, %s167
      %p179 = scmp.eq.s32.totalorder %s31, 1
      %p180 = por %p178, %p179
      %p182 = scmp.ne.s32.totalorder %s167, %s181
      %p183 = scmp.eq.s32.totalorder %s31, 0
      %p184 = por %p182, %p183
      %s186 = sadd.s32 %s185, 1
      %p189 = scmp.eq.s32.totalorder %s25, 1
      %p190 = scmp.ne.s32.totalorder %s185, %s187
      %p191 = scmp.eq.s32.totalorder %s25, 0
      %p192 = por %p190, %p191
      %p193 = scmp.ne.s32.totalorder %s185, %s187
      %p194 = scmp.eq.s32.totalorder %s30, 1
      %p195 = por %p193, %p194
      %p196 = scmp.ne.s32.totalorder %s187, %s188
      %p197 = scmp.eq.s32.totalorder %s30, 0
      %p198 = por %p196, %p197
      %p199 = scmp.ne.s32.totalorder %s187, %s188
      %p200 = scmp.eq.s32.totalorder %s31, 1
      %p201 = por %p199, %p200
      %p203 = scmp.ne.s32.totalorder %s188, %s202
      %p204 = scmp.eq.s32.totalorder %s31, 0
      %p205 = por %p203, %p204
      %s207 = sadd.s32 %s206, 1
      %p210 = scmp.eq.s32.totalorder %s25, 1
      %p211 = scmp.ne.s32.totalorder %s206, %s208
      %p212 = scmp.eq.s32.totalorder %s25, 0
      %p213 = por %p211, %p212
      %p214 = scmp.ne.s32.totalorder %s206, %s208
      %p215 = scmp.eq.s32.totalorder %s30, 1
      %p216 = por %p214, %p215
      %p217 = scmp.ne.s32.totalorder %s208, %s209
      %p218 = scmp.eq.s32.totalorder %s30, 0
      %p219 = por %p217, %p218
      %p220 = scmp.ne.s32.totalorder %s208, %s209
      %p221 = scmp.eq.s32.totalorder %s31, 1
      %p222 = por %p220, %p221
      %p224 = scmp.ne.s32.totalorder %s209, %s223
      %p225 = scmp.eq.s32.totalorder %s31, 0
      %p226 = por %p224, %p225
      %s228 = sadd.s32 %s227, 1
      %p231 = scmp.eq.s32.totalorder %s25, 1
      %p232 = scmp.ne.s32.totalorder %s227, %s229
      %p233 = scmp.eq.s32.totalorder %s25, 0
      %p234 = por %p232, %p233
      %p235 = scmp.ne.s32.totalorder %s227, %s229
      %p236 = scmp.eq.s32.totalorder %s30, 1
      %p237 = por %p235, %p236
      %p238 = scmp.ne.s32.totalorder %s229, %s230
      %p239 = scmp.eq.s32.totalorder %s30, 0
      %p240 = por %p238, %p239
      %p241 = scmp.ne.s32.totalorder %s229, %s230
      %p242 = scmp.eq.s32.totalorder %s31, 1
      %p243 = por %p241, %p242
      %p245 = scmp.ne.s32.totalorder %s230, %s244
      %p246 = scmp.eq.s32.totalorder %s31, 0
      %p247 = por %p245, %p246
      %s249 = sadd.s32 %s248, 1
      %p252 = scmp.eq.s32.totalorder %s25, 1
      %p253 = scmp.ne.s32.totalorder %s248, %s250
      %p254 = scmp.eq.s32.totalorder %s25, 0
      %p255 = por %p253, %p254
      %p256 = scmp.ne.s32.totalorder %s248, %s250
      %p257 = scmp.eq.s32.totalorder %s30, 1
      %p258 = por %p256, %p257
      %p259 = scmp.ne.s32.totalorder %s250, %s251
      %p260 = scmp.eq.s32.totalorder %s30, 0
      %p261 = por %p259, %p260
      %p262 = scmp.ne.s32.totalorder %s250, %s251
      %p263 = scmp.eq.s32.totalorder %s31, 1
      %p264 = por %p262, %p263
      %p266 = scmp.ne.s32.totalorder %s251, %s265
      %p267 = scmp.eq.s32.totalorder %s31, 0
      %p268 = por %p266, %p267
      %s270 = sadd.s32 %s269, 1
      %p273 = scmp.eq.s32.totalorder %s25, 1
      %p274 = scmp.ne.s32.totalorder %s269, %s271
      %p275 = scmp.eq.s32.totalorder %s25, 0
      %p276 = por %p274, %p275
      %p277 = scmp.ne.s32.totalorder %s269, %s271
      %p278 = scmp.eq.s32.totalorder %s30, 1
      %p279 = por %p277, %p278
      %p280 = scmp.ne.s32.totalorder %s271, %s272
      %p281 = scmp.eq.s32.totalorder %s30, 0
      %p282 = por %p280, %p281
      %p283 = scmp.ne.s32.totalorder %s271, %s272
      %p284 = scmp.eq.s32.totalorder %s31, 1
      %p285 = por %p283, %p284
      %p287 = scmp.ne.s32.totalorder %s272, %s286
      %p288 = scmp.eq.s32.totalorder %s31, 0
      %p289 = por %p287, %p288
      %s291 = sadd.s32 %s290, 1
      %p294 = scmp.eq.s32.totalorder %s25, 1
      %p295 = scmp.ne.s32.totalorder %s290, %s292
      %p296 = scmp.eq.s32.totalorder %s25, 0
      %p297 = por %p295, %p296
      %p298 = scmp.ne.s32.totalorder %s290, %s292
      %p299 = scmp.eq.s32.totalorder %s30, 1
      %p300 = por %p298, %p299
      %p301 = scmp.ne.s32.totalorder %s292, %s293
      %p302 = scmp.eq.s32.totalorder %s30, 0
      %p303 = por %p301, %p302
      %p304 = scmp.ne.s32.totalorder %s292, %s293
      %p305 = scmp.eq.s32.totalorder %s31, 1
      %p306 = por %p304, %p305
      %p308 = scmp.ne.s32.totalorder %s293, %s307
      %p309 = scmp.eq.s32.totalorder %s31, 0
      %p310 = por %p308, %p309
      %s312 = sadd.s32 %s311, 1
      %p315 = scmp.eq.s32.totalorder %s25, 1
      %p316 = scmp.ne.s32.totalorder %s311, %s313
      %p317 = scmp.eq.s32.totalorder %s25, 0
      %p318 = por %p316, %p317
      %p319 = scmp.ne.s32.totalorder %s311, %s313
      %p320 = scmp.eq.s32.totalorder %s30, 1
      %p321 = por %p319, %p320
      %p322 = scmp.ne.s32.totalorder %s313, %s314
      %p323 = scmp.eq.s32.totalorder %s30, 0
      %p324 = por %p322, %p323
      %p325 = scmp.ne.s32.totalorder %s313, %s314
      %p326 = scmp.eq.s32.totalorder %s31, 1
      %p327 = por %p325, %p326
      %p329 = scmp.ne.s32.totalorder %s314, %s328
      %p330 = scmp.eq.s32.totalorder %s31, 0
      %p331 = por %p329, %p330
      %s333 = sadd.s32 %s332, 1
      %p336 = scmp.eq.s32.totalorder %s25, 1
      %p337 = scmp.ne.s32.totalorder %s332, %s334
      %p338 = scmp.eq.s32.totalorder %s25, 0
      %p339 = por %p337, %p338
      %p340 = scmp.ne.s32.totalorder %s332, %s334
      %p341 = scmp.eq.s32.totalorder %s30, 1
      %p342 = por %p340, %p341
      %p343 = scmp.ne.s32.totalorder %s334, %s335
      %p344 = scmp.eq.s32.totalorder %s30, 0
      %p345 = por %p343, %p344
      %p346 = scmp.ne.s32.totalorder %s334, %s335
      %p347 = scmp.eq.s32.totalorder %s31, 1
      %p348 = por %p346, %p347
      %p350 = scmp.ne.s32.totalorder %s335, %s349
      %p351 = scmp.eq.s32.totalorder %s31, 0
      %p352 = por %p350, %p351
      %s354 = sadd.s32 %s353, 1
      %p357 = scmp.eq.s32.totalorder %s25, 1
      %p358 = scmp.ne.s32.totalorder %s353, %s355
      %p359 = scmp.eq.s32.totalorder %s25, 0
      %p360 = por %p358, %p359
      %p361 = scmp.ne.s32.totalorder %s353, %s355
      %p362 = scmp.eq.s32.totalorder %s30, 1
      %p363 = por %p361, %p362
      %p364 = scmp.ne.s32.totalorder %s355, %s356
      %p365 = scmp.eq.s32.totalorder %s30, 0
      %p366 = por %p364, %p365
      %p367 = scmp.ne.s32.totalorder %s355, %s356
      %p368 = scmp.eq.s32.totalorder %s31, 1
      %p369 = por %p367, %p368
      %p371 = scmp.ne.s32.totalorder %s356, %s370
      %p372 = scmp.eq.s32.totalorder %s31, 0
      %p373 = por %p371, %p372
      %s374 = ssub.s32 %s25, %s32
      %p375 = scmp.eq.s32.totalorder %s374, 0
      %s377 = sadd.s32 %s376, 1
      %s378 = scalar_select %p375, %s376, %s377
      %p381 = pneg %p375
      %p382 = scmp.eq.s32.totalorder %s25, 1
      %p383 = por %p381, %p382
      %p384 = scmp.ne.s32.totalorder %s376, %s379
      %p385 = scmp.eq.s32.totalorder %s25, 0
      %p386 = por %p384, %p385
      %p387 = scmp.ne.s32.totalorder %s376, %s379
      %p388 = scmp.eq.s32.totalorder %s30, 1
      %p389 = por %p387, %p388
      %p390 = scmp.ne.s32.totalorder %s379, %s380
      %p391 = scmp.eq.s32.totalorder %s30, 0
      %p392 = por %p390, %p391
      %p393 = scmp.ne.s32.totalorder %s379, %s380
      %p394 = scmp.eq.s32.totalorder %s31, 1
      %p395 = por %p393, %p394
      %p397 = scmp.ne.s32.totalorder %s380, %s396
      %p398 = scmp.eq.s32.totalorder %s31, 0
      %p399 = por %p397, %p398
      %p400 = scmp.le.s32.totalorder 1, %s25
      %p401 = scmp.lt.s32.totalorder %s25, 3
      %p402 = pnand %p400, %p401
      %p403 = pneg %p402
      // Predicated region
      $region9: #{tpu_custom_call.1} parent=5 // pred_check
        _
      $region10: #{tpu_custom_call.1} parent=5 // pred_check_branch
        %405 = sbr.rel (%p402) target = $region12
      $region11: #{tpu_custom_call.1} parent=5 // pred_region
        %s406 = ssub.s32 %s25, 1
        // Predicated region
        $region13: #{tpu_custom_call.1} parent=11 // pred_check
          %p407 = pneg %p72
        $region14: #{tpu_custom_call.1} parent=11 // pred_check_branch
          %409 = sbr.rel (%p407) target = $region16
        $region15: #{tpu_custom_call.1} parent=11 // pred_region
          _
        $region16: #{tpu_custom_call.1} parent=11 // pred_fallthru
          _
        // Predicated region
        $region17: #{tpu_custom_call.1} parent=11 // pred_check
          %p410 = pneg %p93
        $region18: #{tpu_custom_call.1} parent=11 // pred_check_branch
          %412 = sbr.rel (%p410) target = $region20
        $region19: #{tpu_custom_call.1} parent=11 // pred_region
          _
        $region20: #{tpu_custom_call.1} parent=11 // pred_fallthru
          _
        // Predicated region
        $region21: #{tpu_custom_call.1} parent=11 // pred_check
          %p413 = pneg %p114
        $region22: #{tpu_custom_call.1} parent=11 // pred_check_branch
          %415 = sbr.rel (%p413) target = $region24
        $region23: #{tpu_custom_call.1} parent=11 // pred_region
          _
        $region24: #{tpu_custom_call.1} parent=11 // pred_fallthru
          _
        // Predicated region
        $region25: #{tpu_custom_call.1} parent=11 // pred_check
          %p416 = pneg %p135
        $region26: #{tpu_custom_call.1} parent=11 // pred_check_branch
          %418 = sbr.rel (%p416) target = $region28
        $region27: #{tpu_custom_call.1} parent=11 // pred_region
          _
        $region28: #{tpu_custom_call.1} parent=11 // pred_fallthru
          _
        // Predicated region
        $region29: #{tpu_custom_call.1} parent=11 // pred_check
          %p419 = pneg %p156
        $region30: #{tpu_custom_call.1} parent=11 // pred_check_branch
          %421 = sbr.rel (%p419) target = $region32
        $region31: #{tpu_custom_call.1} parent=11 // pred_region
          _
        $region32: #{tpu_custom_call.1} parent=11 // pred_fallthru
          _
        // Predicated region
        $region33: #{tpu_custom_call.1} parent=11 // pred_check
          %p422 = pneg %p177
        $region34: #{tpu_custom_call.1} parent=11 // pred_check_branch
          %424 = sbr.rel (%p422) target = $region36
        $region35: #{tpu_custom_call.1} parent=11 // pred_region
          _
        $region36: #{tpu_custom_call.1} parent=11 // pred_fallthru
          _
        // Predicated region
        $region37: #{tpu_custom_call.1} parent=11 // pred_check
          %p425 = pneg %p198
        $region38: #{tpu_custom_call.1} parent=11 // pred_check_branch
          %427 = sbr.rel (%p425) target = $region40
        $region39: #{tpu_custom_call.1} parent=11 // pred_region
          _
        $region40: #{tpu_custom_call.1} parent=11 // pred_fallthru
          _
        // Predicated region
        $region41: #{tpu_custom_call.1} parent=11 // pred_check
          %p428 = pneg %p219
        $region42: #{tpu_custom_call.1} parent=11 // pred_check_branch
          %430 = sbr.rel (%p428) target = $region44
        $region43: #{tpu_custom_call.1} parent=11 // pred_region
          _
        $region44: #{tpu_custom_call.1} parent=11 // pred_fallthru
          _
        // Predicated region
        $region45: #{tpu_custom_call.1} parent=11 // pred_check
          %p431 = pneg %p240
        $region46: #{tpu_custom_call.1} parent=11 // pred_check_branch
          %433 = sbr.rel (%p431) target = $region48
        $region47: #{tpu_custom_call.1} parent=11 // pred_region
          _
        $region48: #{tpu_custom_call.1} parent=11 // pred_fallthru
          _
        // Predicated region
        $region49: #{tpu_custom_call.1} parent=11 // pred_check
          %p434 = pneg %p261
        $region50: #{tpu_custom_call.1} parent=11 // pred_check_branch
          %436 = sbr.rel (%p434) target = $region52
        $region51: #{tpu_custom_call.1} parent=11 // pred_region
          _
        $region52: #{tpu_custom_call.1} parent=11 // pred_fallthru
          _
        // Predicated region
        $region53: #{tpu_custom_call.1} parent=11 // pred_check
          %p437 = pneg %p282
        $region54: #{tpu_custom_call.1} parent=11 // pred_check_branch
          %439 = sbr.rel (%p437) target = $region56
        $region55: #{tpu_custom_call.1} parent=11 // pred_region
          _
        $region56: #{tpu_custom_call.1} parent=11 // pred_fallthru
          _
        // Predicated region
        $region57: #{tpu_custom_call.1} parent=11 // pred_check
          %p440 = pneg %p303
        $region58: #{tpu_custom_call.1} parent=11 // pred_check_branch
          %442 = sbr.rel (%p440) target = $region60
        $region59: #{tpu_custom_call.1} parent=11 // pred_region
          _
        $region60: #{tpu_custom_call.1} parent=11 // pred_fallthru
          _
        // Predicated region
        $region61: #{tpu_custom_call.1} parent=11 // pred_check
          %p443 = pneg %p324
        $region62: #{tpu_custom_call.1} parent=11 // pred_check_branch
          %445 = sbr.rel (%p443) target = $region64
        $region63: #{tpu_custom_call.1} parent=11 // pred_region
          _
        $region64: #{tpu_custom_call.1} parent=11 // pred_fallthru
          _
        // Predicated region
        $region65: #{tpu_custom_call.1} parent=11 // pred_check
          %p446 = pneg %p345
        $region66: #{tpu_custom_call.1} parent=11 // pred_check_branch
          %448 = sbr.rel (%p446) target = $region68
        $region67: #{tpu_custom_call.1} parent=11 // pred_region
          _
        $region68: #{tpu_custom_call.1} parent=11 // pred_fallthru
          _
        // Predicated region
        $region69: #{tpu_custom_call.1} parent=11 // pred_check
          %p449 = pneg %p366
        $region70: #{tpu_custom_call.1} parent=11 // pred_check_branch
          %451 = sbr.rel (%p449) target = $region72
        $region71: #{tpu_custom_call.1} parent=11 // pred_region
          _
        $region72: #{tpu_custom_call.1} parent=11 // pred_fallthru
          _
      $region12: #{tpu_custom_call.1} parent=5 // pred_fallthru
        _
      %p452 = scmp.lt.s32.totalorder %s25, 2
      // Predicated region
      $region73: #{tpu_custom_call.1} parent=5 // pred_check
        %p453 = pneg %p452
      $region74: #{tpu_custom_call.1} parent=5 // pred_check_branch
        %455 = sbr.rel (%p453) target = $region76
      $region75: #{tpu_custom_call.1} parent=5 // pred_region
        // Predicated region
        $region77: #{tpu_custom_call.1} parent=75 // pred_check
          %p456 = pneg %p45
        $region78: #{tpu_custom_call.1} parent=75 // pred_check_branch
          %458 = sbr.rel (%p456) target = $region80
        $region79: #{tpu_custom_call.1} parent=75 // pred_region
          %s459 = sand.u32 %s35, 1
          %s460 = sand.u32 %s35, 1
          %s461 = smul.addr %s460, 16
          %s462 = scalar_lea.vmem [#allocation2], %s461
          %s463 = smul.addr %s25, 8
          %s464 = scalar_lea.vmem %s0, %s463
          // Predicated region
          $region81: #{tpu_custom_call.1} parent=79 // pred_check
            _
          $region82: #{tpu_custom_call.1} parent=79 // pred_check_branch
            %466 = sbr.rel (0) target = $region84
          $region83: #{tpu_custom_call.1} parent=79 // pred_region
            // Predicated region
            $region85: #{tpu_custom_call.1} parent=83 // pred_check
              _
            $region86: #{tpu_custom_call.1} parent=83 // pred_check_branch
              %468 = sbr.rel (0) target = $region88
            $region87: #{tpu_custom_call.1} parent=83 // pred_region
              // Predicated region
              $region100: #{tpu_custom_call.1} parent=87 // pred_check
                _
              $region101: #{tpu_custom_call.1} parent=87 // pred_check_branch
                %486 = sbr.rel (0) target = $region103
              $region102: #{tpu_custom_call.1} parent=87 // pred_region
                loop: start=0, step=1, limit=1
                $region104: #{tpu_custom_call.1} parent=102 // loop_pre_header
                  _
                $region105: #{tpu_custom_call.1} parent=102 // loop_header
                  %s488 = sphi 0, %s492
                  %p489 = scmp.ge.s32.totalorder %s488, 1
                  %s493 = sphi %s464, %s464
                  %s494 = sphi %s462, %s462
                $region106: #{tpu_custom_call.1} parent=102 // loop_header_branch
                  %491 = sbr.rel (%p489) target = $region110
                $region107: #{tpu_custom_call.1} parent=102 // loop_body
                  %v495 = vld [vmem:[%s493] sm:$0xff]
                  %496 = vst [vmem:[%s494] sm:$0xff] %v495
                  %v497 = vld [vmem:[%s493 + $0x10] sm:$0xff]
                  %498 = vst [vmem:[%s494 + $0x8] sm:$0xff] %v497
                $region108: #{tpu_custom_call.1} parent=102 // loop_footer
                  %s492 = sadd.s32 1, %s488
                $region109: #{tpu_custom_call.1} parent=102 // loop_footer_branch
                  %487 = sbr.rel target = $region105
                $region110: #{tpu_custom_call.1} parent=102 // loop_exit
                  _
              $region103: #{tpu_custom_call.1} parent=87 // pred_fallthru
                _
              // Predicated region
              $region111: #{tpu_custom_call.1} parent=87 // pred_check
                _
              $region112: #{tpu_custom_call.1} parent=87 // pred_check_branch
                %500 = sbr.rel target = $region114
              $region113: #{tpu_custom_call.1} parent=87 // pred_region
                _
              $region114: #{tpu_custom_call.1} parent=87 // pred_fallthru
                _
            $region88: #{tpu_custom_call.1} parent=83 // pred_fallthru
              _
            // Predicated region
            $region89: #{tpu_custom_call.1} parent=83 // pred_check
              _
            $region90: #{tpu_custom_call.1} parent=83 // pred_check_branch
              %470 = sbr.rel target = $region92
            $region91: #{tpu_custom_call.1} parent=83 // pred_region
              %s472 = ssub.s32 256, 1
              loop: start=0, step=1, limit=1
              $region93: #{tpu_custom_call.1} parent=91 // loop_pre_header
                _
              $region94: #{tpu_custom_call.1} parent=91 // loop_header
                %s474 = sphi 0, %s478
                %p475 = scmp.ge.s32.totalorder %s474, 1
                %s479 = sphi %s464, %s464
                %s480 = sphi %s462, %s462
              $region95: #{tpu_custom_call.1} parent=91 // loop_header_branch
                %477 = sbr.rel (%p475) target = $region99
              $region96: #{tpu_custom_call.1} parent=91 // loop_body
                %v481 = vld [vmem:[%s479] sm:%s472]
                %482 = vst [vmem:[%s480] sm:%s472] %v481
                %v483 = vld [vmem:[%s479 + $0x10] sm:%s472]
                %484 = vst [vmem:[%s480 + $0x8] sm:%s472] %v483
              $region97: #{tpu_custom_call.1} parent=91 // loop_footer
                %s478 = sadd.s32 1, %s474
              $region98: #{tpu_custom_call.1} parent=91 // loop_footer_branch
                %473 = sbr.rel target = $region94
              $region99: #{tpu_custom_call.1} parent=91 // loop_exit
                _
            $region92: #{tpu_custom_call.1} parent=83 // pred_fallthru
              _
          $region84: #{tpu_custom_call.1} parent=79 // pred_fallthru
            _
          %501 = vnop
        $region80: #{tpu_custom_call.1} parent=75 // pred_fallthru
          _
      $region76: #{tpu_custom_call.1} parent=5 // pred_fallthru
        _
      %p502 = scmp.le.s32.totalorder 1, %s25
      %p503 = scmp.lt.s32.totalorder %s25, 3
      %p504 = pnand %p502, %p503
      %p505 = pneg %p504
      // Predicated region
      $region115: #{tpu_custom_call.1} parent=5 // pred_check
        _
      $region116: #{tpu_custom_call.1} parent=5 // pred_check_branch
        %507 = sbr.rel (%p504) target = $region118
      $region117: #{tpu_custom_call.1} parent=5 // pred_region
        %s508 = ssub.s32 %s25, 1
        %s509 = sand.u32 %s38, 1
        %s510 = sand.u32 %s38, 1
        %s511 = smul.addr %s510, 16
        %s512 = scalar_lea.vmem [#allocation2], %s511
        // Predicated region
        $region119: #{tpu_custom_call.1} parent=117 // pred_check
          %p513 = pneg %p51
        $region120: #{tpu_custom_call.1} parent=117 // pred_check_branch
          %515 = sbr.rel (%p513) target = $region122
        $region121: #{tpu_custom_call.1} parent=117 // pred_region
          _
        $region122: #{tpu_custom_call.1} parent=117 // pred_fallthru
          _
        %s516 = sand.u32 %s38, 1
        %s517 = sand.u32 %s38, 1
        %s518 = smul.addr %s517, 16
        %s519 = scalar_lea.vmem [#allocation2], %s518
        %p520 = pneg %p51
        %p521 = pneg %p48
        %p522 = pneg %p72
        %p523 = pneg %p69
        %p524 = pneg %p93
        %p525 = pneg %p90
        %p526 = pneg %p114
        %p527 = pneg %p111
        %p528 = pneg %p135
        %p529 = pneg %p132
        %p530 = pneg %p156
        %p531 = pneg %p153
        %p532 = pneg %p177
        %p533 = pneg %p174
        %p534 = pneg %p198
        %p535 = pneg %p195
        %p536 = pneg %p219
        %p537 = pneg %p216
        %p538 = pneg %p240
        %p539 = pneg %p237
        %p540 = pneg %p261
        %p541 = pneg %p258
        %p542 = pneg %p282
        %p543 = pneg %p279
        %p544 = pneg %p303
        %p545 = pneg %p300
        %p546 = pneg %p324
        %p547 = pneg %p321
        %p548 = pneg %p345
        %p549 = pneg %p342
        %p550 = pneg %p366
        %p551 = pneg %p363
        %p552 = pneg %p392
        %p553 = pneg %p389
        %s554 = sand.u32 %s379, 1
        %s555 = scalar_lea.sflag [#allocation4], %s554
        %s556 = sand.u32 %s379, 1
        %s557 = smul.addr %s556, 32
        %s558 = scalar_lea.vmem [#allocation3], %s557
        %v560 = vld [vmem:[%s512] sm:$0xff]
        %v561 = vld [vmem:[%s512 + $0x8] sm:$0xff]
        %v562 = vld [vmem:[%s1] sm:$0x1]
        %v563 = vld [vmem:[%s2] sm:$0x1]
        %v564 = vld [vmem:[%s3] sm:$0xff]
        %v565 = vld [vmem:[%s3 + $0x8] sm:$0xff]
        %567 = vset.pattern.permute.xlu0 0
        %568 = vperm.xlu0 %567, %v564
        %v569 = vpop.permute.xlu0 %568
        %572 = vset.pattern.permute.xlu0 0
        %573 = vperm.xlu0 %572, %v565
        %v574 = vpop.permute.xlu0 %573
        %v576 = vmul.f32 %v560, %v569
        %v577 = vmul.f32 %v561, %v574
        %v578 = vld [vmem:[%s4] sm:$0xff]
        %v579 = vld [vmem:[%s4 + $0x8] sm:$0xff]
        %581 = vset.pattern.permute.xlu0 0
        %582 = vperm.xlu0 %581, %v578
        %v583 = vpop.permute.xlu0 %582
        %586 = vset.pattern.permute.xlu0 0
        %587 = vperm.xlu0 %586, %v579
        %v588 = vpop.permute.xlu0 %587
        %v590 = vadd.f32 %v576, %v583
        %v591 = vadd.f32 %v577, %v588
        %v592 = vmax.f32 %v590, 0.0
        %v593 = vmax.f32 %v591, 0.0
        %594 = vrot.lane.b32.xlu0 %v592, 1
        %v595 = vpop.permute.xlu0 %594
        %596 = vrot.lane.b32.xlu0 %v593, 1
        %v597 = vpop.permute.xlu0 %596
        %v599 = vperm.slane %v562, 0
        %v601 = vmul.f32 %v595, %v599
        %v602 = vmul.f32 %v597, %v599
        %603 = vrot.lane.b32.xlu0 %v592, 127
        %v604 = vpop.permute.xlu0 %603
        %605 = vrot.lane.b32.xlu0 %v593, 127
        %v606 = vpop.permute.xlu0 %605
        %v608 = vperm.slane %v563, 0
        %v610 = vmul.f32 %v604, %v608
        %v611 = vmul.f32 %v606, %v608
        %v612 = vld [vmem:[%s5] sm:$0xf]
        %v613 = vld [vmem:[%s5 + $0x4] sm:$0xf]
        %v614 = vld [vmem:[%s5 + $0x8] sm:$0xf]
        %v615 = vld [vmem:[%s5 + $0xc] sm:$0xf]
        %v616 = vpack.c.bf16 %v602, %v601
        %v617 = vpack.c.bf16 %v593, %v592
        %v618 = vpack.c.bf16 %v611, %v610
        %v623 = vunpack.c.l.b16 %v612
        %v624 = vunpack.c.l.b16 %v613
        %v625 = vunpack.c.l.b16 %v614
        %v626 = vunpack.c.l.b16 %v615
        %v627 = vpack.c.b16 %v624, %v623
        %v628 = vpack.c.b16 %v626, %v625
        %vm629 = vcmask 392192
        %v631 = vsel %vm629, %v627, 0
        %v634 = vsel %vm629, %v628, 0
        %636 = vmatpush.bf16.msra.mxu0 0
        %637 = vmatpush.bf16.msra.mxu0 0
        %638 = vmatpush.bf16.msra.mxu0 0
        %639 = vmatpush.bf16.msra.mxu0 0
        %640 = vmatpush.bf16.msra.mxu0 0
        %641 = vmatpush.bf16.msra.mxu0 %v618
        %642 = vmatpush.bf16.msra.mxu0 %v617
        %643 = vmatpush.bf16.msra.mxu0 %v616
        %644 = vmatmul.bf16.gmra.mxu0 %v631
        %v645 = vpop.f32.mrf.mxu0
        %v646 = vadd.f32 0.0, %v645
        %v647 = vpop.f32.mrf.mxu0
        %v648 = vadd.f32 0.0, %v647
        %649 = vmatmul.bf16.gmra.mxu0 %v634
        %v650 = vpop.f32.mrf.mxu0
        %v651 = vadd.f32 0.0, %v650
        %v652 = vpop.f32.mrf.mxu0
        %v653 = vadd.f32 0.0, %v652
        %654 = vdwg.mxu0
        %v655 = vld [vmem:[%s6] sm:$0xff]
        %v656 = vld [vmem:[%s6 + $0x8] sm:$0xff]
        %v657 = vld [vmem:[%s6 + $0x10] sm:$0xff]
        %v658 = vld [vmem:[%s6 + $0x18] sm:$0xff]
        %660 = vset.pattern.permute.xlu0 0
        %661 = vperm.xlu0 %660, %v655
        %v662 = vpop.permute.xlu0 %661
        %665 = vset.pattern.permute.xlu0 0
        %666 = vperm.xlu0 %665, %v656
        %v667 = vpop.permute.xlu0 %666
        %670 = vset.pattern.permute.xlu0 0
        %671 = vperm.xlu0 %670, %v657
        %v672 = vpop.permute.xlu0 %671
        %675 = vset.pattern.permute.xlu0 0
        %676 = vperm.xlu0 %675, %v658
        %v677 = vpop.permute.xlu0 %676
        %v679 = vmul.f32 %v646, %v662
        %v680 = vmul.f32 %v648, %v667
        %v681 = vmul.f32 %v651, %v672
        %v682 = vmul.f32 %v653, %v677
        %v683 = vld [vmem:[%s7] sm:$0xff]
        %v684 = vld [vmem:[%s7 + $0x8] sm:$0xff]
        %v685 = vld [vmem:[%s7 + $0x10] sm:$0xff]
        %v686 = vld [vmem:[%s7 + $0x18] sm:$0xff]
        %688 = vset.pattern.permute.xlu0 0
        %689 = vperm.xlu0 %688, %v683
        %v690 = vpop.permute.xlu0 %689
        %693 = vset.pattern.permute.xlu0 0
        %694 = vperm.xlu0 %693, %v684
        %v695 = vpop.permute.xlu0 %694
        %698 = vset.pattern.permute.xlu0 0
        %699 = vperm.xlu0 %698, %v685
        %v700 = vpop.permute.xlu0 %699
        %703 = vset.pattern.permute.xlu0 0
        %704 = vperm.xlu0 %703, %v686
        %v705 = vpop.permute.xlu0 %704
        %v707 = vadd.f32 %v679, %v690
        %v708 = vadd.f32 %v680, %v695
        %v709 = vadd.f32 %v681, %v700
        %v710 = vadd.f32 %v682, %v705
        %v711 = vmax.f32 %v707, 0.0
        %v712 = vmax.f32 %v708, 0.0
        %v713 = vmax.f32 %v709, 0.0
        %v714 = vmax.f32 %v710, 0.0
        %715 = vrot.lane.b32.xlu0 %v711, 1
        %v716 = vpop.permute.xlu0 %715
        %717 = vrot.lane.b32.xlu0 %v712, 1
        %v718 = vpop.permute.xlu0 %717
        %719 = vrot.lane.b32.xlu0 %v713, 1
        %v720 = vpop.permute.xlu0 %719
        %721 = vrot.lane.b32.xlu0 %v714, 1
        %v722 = vpop.permute.xlu0 %721
        %v723 = vmul.f32 %v716, %v599
        %v724 = vmul.f32 %v718, %v599
        %v725 = vmul.f32 %v720, %v599
        %v726 = vmul.f32 %v722, %v599
        %727 = vrot.lane.b32.xlu0 %v711, 127
        %v728 = vpop.permute.xlu0 %727
        %729 = vrot.lane.b32.xlu0 %v712, 127
        %v730 = vpop.permute.xlu0 %729
        %731 = vrot.lane.b32.xlu0 %v713, 127
        %v732 = vpop.permute.xlu0 %731
        %733 = vrot.lane.b32.xlu0 %v714, 127
        %v734 = vpop.permute.xlu0 %733
        %v735 = vmul.f32 %v728, %v608
        %v736 = vmul.f32 %v730, %v608
        %v737 = vmul.f32 %v732, %v608
        %v738 = vmul.f32 %v734, %v608
        %v739 = vld [vmem:[%s8] sm:$0xf]
        %v740 = vld [vmem:[%s8 + $0x4] sm:$0xf]
        %v741 = vld [vmem:[%s8 + $0x8] sm:$0xf]
        %v742 = vld [vmem:[%s8 + $0xc] sm:$0xf]
        %v743 = vpack.c.bf16 %v724, %v723
        %v744 = vpack.c.bf16 %v726, %v725
        %v745 = vpack.c.bf16 %v712, %v711
        %v746 = vpack.c.bf16 %v714, %v713
        %v747 = vpack.c.bf16 %v736, %v735
        %v748 = vpack.c.bf16 %v738, %v737
        %v753 = vunpack.c.l.b16 %v739
        %v754 = vunpack.c.l.b16 %v740
        %v755 = vunpack.c.l.b16 %v741
        %v756 = vunpack.c.l.b16 %v742
        %v757 = vpack.c.b16 %v754, %v753
        %v758 = vpack.c.b16 %v756, %v755
        %vm759 = vcmask 785408
        %v761 = vsel %vm759, %v757, 0
        %v764 = vsel %vm759, %v758, 0
        %766 = vmatpush.bf16.msra.mxu0 0
        %767 = vmatpush.bf16.msra.mxu0 0
        %768 = vmatpush.bf16.msra.mxu0 %v748
        %769 = vmatpush.bf16.msra.mxu0 %v747
        %770 = vmatpush.bf16.msra.mxu0 %v746
        %771 = vmatpush.bf16.msra.mxu0 %v745
        %772 = vmatpush.bf16.msra.mxu0 %v744
        %773 = vmatpush.bf16.msra.mxu0 %v743
        %774 = vmatmul.bf16.gmra.mxu0 %v761
        %v775 = vpop.f32.mrf.mxu0
        %v776 = vadd.f32 0.0, %v775
        %v777 = vpop.f32.mrf.mxu0
        %v778 = vadd.f32 0.0, %v777
        %779 = vmatmul.bf16.gmra.mxu0 %v764
        %v780 = vpop.f32.mrf.mxu0
        %v781 = vadd.f32 0.0, %v780
        %v782 = vpop.f32.mrf.mxu0
        %v783 = vadd.f32 0.0, %v782
        %784 = vdwg.mxu0
        %v785 = vld [vmem:[%s13] sm:$0xff]
        %v786 = vld [vmem:[%s13 + $0x8] sm:$0xff]
        %v787 = vld [vmem:[%s13 + $0x10] sm:$0xff]
        %v788 = vld [vmem:[%s13 + $0x18] sm:$0xff]
        %v789 = vld [vmem:[%s13 + $0x20] sm:$0xff]
        %v790 = vld [vmem:[%s13 + $0x28] sm:$0xff]
        %v791 = vld [vmem:[%s13 + $0x30] sm:$0xff]
        %v792 = vld [vmem:[%s13 + $0x38] sm:$0xff]
        %v793 = vld [vmem:[%s13 + $0x40] sm:$0xff]
        %v794 = vld [vmem:[%s13 + $0x48] sm:$0xff]
        %v795 = vld [vmem:[%s13 + $0x50] sm:$0xff]
        %v796 = vld [vmem:[%s13 + $0x58] sm:$0xff]
        %v797 = vld [vmem:[%s13 + $0x60] sm:$0xff]
        %v798 = vld [vmem:[%s13 + $0x68] sm:$0xff]
        %v799 = vld [vmem:[%s13 + $0x70] sm:$0xff]
        %v800 = vld [vmem:[%s13 + $0x78] sm:$0xff]
        %801 = vmatpush.msra.mxu0 %v800
        %802 = vmatpush.msra.mxu0 %v799
        %803 = vmatpush.msra.mxu0 %v798
        %804 = vmatpush.msra.mxu0 %v797
        %805 = vmatpush.msra.mxu0 %v796
        %806 = vmatpush.msra.mxu0 %v795
        %807 = vmatpush.msra.mxu0 %v794
        %808 = vmatpush.msra.mxu0 %v793
        %809 = vmatpush.msra.mxu0 %v792
        %810 = vmatpush.msra.mxu0 %v791
        %811 = vmatpush.msra.mxu0 %v790
        %812 = vmatpush.msra.mxu0 %v789
        %813 = vmatpush.msra.mxu0 %v788
        %814 = vmatpush.msra.mxu0 %v787
        %815 = vmatpush.msra.mxu0 %v786
        %816 = vmatpush.msra.mxu0 %v785
        %817 = vmatmul.f32.gmra.mxu0 %v776
        %v818 = vpop.f32.mrf.mxu0
        %v819 = vadd.f32 0.0, %v818
        %820 = vmatmul.f32.gmra.mxu0 %v778
        %v821 = vpop.f32.mrf.mxu0
        %v822 = vadd.f32 0.0, %v821
        %823 = vmatmul.f32.gmra.mxu0 %v781
        %v824 = vpop.f32.mrf.mxu0
        %v825 = vadd.f32 0.0, %v824
        %826 = vmatmul.f32.gmra.mxu0 %v783
        %v827 = vpop.f32.mrf.mxu0
        %v828 = vadd.f32 0.0, %v827
        %829 = vdwg.mxu0
        %v830 = vld [vmem:[%s9] sm:$0x3]
        %v831 = vld [vmem:[%s10] sm:$0x3]
        %833 = vset.pattern.permute.xlu0 0
        %834 = vperm.xlu0 %833, %v831
        %v835 = vpop.permute.xlu0 %834
        %vm837 = vcmask 261120
        %v839 = vsel %vm837, %v830, 0
        %841 = vmatpush.msra.mxu0 0.0
        %842 = vmatpush.msra.mxu0 0.0
        %843 = vmatpush.msra.mxu0 0.0
        %844 = vmatpush.msra.mxu0 0.0
        %845 = vmatpush.msra.mxu0 0.0
        %846 = vmatpush.msra.mxu0 0.0
        %847 = vmatpush.msra.mxu0 0.0
        %848 = vmatpush.msra.mxu0 0.0
        %849 = vmatpush.msra.mxu0 0.0
        %850 = vmatpush.msra.mxu0 0.0
        %851 = vmatpush.msra.mxu0 0.0
        %852 = vmatpush.msra.mxu0 0.0
        %853 = vmatpush.msra.mxu0 %v828
        %854 = vmatpush.msra.mxu0 %v825
        %855 = vmatpush.msra.mxu0 %v822
        %856 = vmatpush.msra.mxu0 %v819
        %857 = vmatmul.f32.gmra.mxu0 %v839
        %v858 = vpop.f32.mrf.mxu0
        %v859 = vadd.f32 %v835, %v858
        %860 = vdwg.mxu0
        %v861 = vmax.f32 %v859, 0.0
        %v862 = vld [vmem:[%s11] sm:$0xff]
        %v863 = vld [vmem:[%s11 + $0x8] sm:$0xff]
        %v864 = vld [vmem:[%s11 + $0x10] sm:$0xff]
        %v865 = vld [vmem:[%s11 + $0x18] sm:$0xff]
        %v866 = vld [vmem:[%s12] sm:$0xff]
        %v867 = vld [vmem:[%s12 + $0x8] sm:$0xff]
        %v868 = vld [vmem:[%s12 + $0x10] sm:$0xff]
        %v869 = vld [vmem:[%s12 + $0x18] sm:$0xff]
        %871 = vset.pattern.permute.xlu0 0
        %872 = vperm.xlu0 %871, %v866
        %v873 = vpop.permute.xlu0 %872
        %876 = vset.pattern.permute.xlu0 0
        %877 = vperm.xlu0 %876, %v867
        %v878 = vpop.permute.xlu0 %877
        %881 = vset.pattern.permute.xlu0 0
        %882 = vperm.xlu0 %881, %v868
        %v883 = vpop.permute.xlu0 %882
        %886 = vset.pattern.permute.xlu0 0
        %887 = vperm.xlu0 %886, %v869
        %v888 = vpop.permute.xlu0 %887
        %vm890 = vcmask 15360
        %v892 = vsel %vm890, %v862, 0
        %v895 = vsel %vm890, %v863, 0
        %v898 = vsel %vm890, %v864, 0
        %v901 = vsel %vm890, %v865, 0
        %vm903 = vcmask 1041408
        %v905 = vsel %vm903, %v861, 0
        %907 = vmatpush.msra.mxu0 0.0
        %908 = vmatpush.msra.mxu0 0.0
        %909 = vmatpush.msra.mxu0 0.0
        %910 = vmatpush.msra.mxu0 0.0
        %911 = vmatpush.msra.mxu0 0.0
        %912 = vmatpush.msra.mxu0 0.0
        %913 = vmatpush.msra.mxu0 0.0
        %914 = vmatpush.msra.mxu0 0.0
        %915 = vmatpush.msra.mxu0 0.0
        %916 = vmatpush.msra.mxu0 0.0
        %917 = vmatpush.msra.mxu0 0.0
        %918 = vmatpush.msra.mxu0 0.0
        %919 = vmatpush.msra.mxu0 0.0
        %920 = vmatpush.msra.mxu0 0.0
        %921 = vmatpush.msra.mxu0 0.0
        %922 = vmatpush.msra.mxu0 %v905
        %923 = vmatmul.f32.gmra.mxu0 %v892
        %v924 = vpop.f32.mrf.mxu0
        %v925 = vadd.f32 %v873, %v924
        %926 = vmatmul.f32.gmra.mxu0 %v895
        %v927 = vpop.f32.mrf.mxu0
        %v928 = vadd.f32 %v878, %v927
        %929 = vmatmul.f32.gmra.mxu0 %v898
        %v930 = vpop.f32.mrf.mxu0
        %v931 = vadd.f32 %v883, %v930
        %932 = vmatmul.f32.gmra.mxu0 %v901
        %v933 = vpop.f32.mrf.mxu0
        %v934 = vadd.f32 %v888, %v933
        %935 = vdwg.mxu0
        %v936 = vxor.u32 %v925, 2147483648
        %v937 = vxor.u32 %v928, 2147483648
        %v938 = vxor.u32 %v931, 2147483648
        %v939 = vxor.u32 %v934, 2147483648
        %v940 = vmul.f32 %v936, 1.442695
        %v941 = vpow.pop %v940
        %v942 = vmul.f32 %v937, 1.442695
        %v943 = vpow.pop %v942
        %v944 = vmul.f32 %v938, 1.442695
        %v945 = vpow.pop %v944
        %v946 = vmul.f32 %v939, 1.442695
        %v947 = vpow.pop %v946
        %v948 = vadd.f32 %v941, 1.0
        %v949 = vadd.f32 %v943, 1.0
        %v950 = vadd.f32 %v945, 1.0
        %v951 = vadd.f32 %v947, 1.0
        %v952 = vrcp.pop %v948
        %v953 = vmul.f32 %v948, %v952
        %v954 = vsub.f32 1.0, %v953
        %v955 = vmul.f32 %v952, %v954
        %v956 = vadd.f32 %v952, %v955
        %vm957 = vweird.f32 %v948
        %vm958 = vweird.f32 %v952
        %vm959 = vmor %vm957, %vm958
        %v960 = vsel %vm959, %v952, %v956
        %v961 = vand.u32 2147483647, %v948
        %vm962 = vcmp.eq.f32.partialorder %v961, 8.507059e+37
        %v963 = vand.u32 %v948, 2147483648
        %v964 = vor.u32 1.1754944e-38, %v963
        %v965 = vsel %vm962, %v964, %v960
        %v966 = vmul.f32 1.0, %v965
        %v967 = vrcp.pop %v949
        %v968 = vmul.f32 %v949, %v967
        %v969 = vsub.f32 1.0, %v968
        %v970 = vmul.f32 %v967, %v969
        %v971 = vadd.f32 %v967, %v970
        %vm972 = vweird.f32 %v949
        %vm973 = vweird.f32 %v967
        %vm974 = vmor %vm972, %vm973
        %v975 = vsel %vm974, %v967, %v971
        %v976 = vand.u32 2147483647, %v949
        %vm977 = vcmp.eq.f32.partialorder %v976, 8.507059e+37
        %v978 = vand.u32 %v949, 2147483648
        %v979 = vor.u32 1.1754944e-38, %v978
        %v980 = vsel %vm977, %v979, %v975
        %v981 = vmul.f32 1.0, %v980
        %v982 = vrcp.pop %v950
        %v983 = vmul.f32 %v950, %v982
        %v984 = vsub.f32 1.0, %v983
        %v985 = vmul.f32 %v982, %v984
        %v986 = vadd.f32 %v982, %v985
        %vm987 = vweird.f32 %v950
        %vm988 = vweird.f32 %v982
        %vm989 = vmor %vm987, %vm988
        %v990 = vsel %vm989, %v982, %v986
        %v991 = vand.u32 2147483647, %v950
        %vm992 = vcmp.eq.f32.partialorder %v991, 8.507059e+37
        %v993 = vand.u32 %v950, 2147483648
        %v994 = vor.u32 1.1754944e-38, %v993
        %v995 = vsel %vm992, %v994, %v990
        %v996 = vmul.f32 1.0, %v995
        %v997 = vrcp.pop %v951
        %v998 = vmul.f32 %v951, %v997
        %v999 = vsub.f32 1.0, %v998
        %v1000 = vmul.f32 %v997, %v999
        %v1001 = vadd.f32 %v997, %v1000
        %vm1002 = vweird.f32 %v951
        %vm1003 = vweird.f32 %v997
        %vm1004 = vmor %vm1002, %vm1003
        %v1005 = vsel %vm1004, %v997, %v1001
        %v1006 = vand.u32 2147483647, %v951
        %vm1007 = vcmp.eq.f32.partialorder %v1006, 8.507059e+37
        %v1008 = vand.u32 %v951, 2147483648
        %v1009 = vor.u32 1.1754944e-38, %v1008
        %v1010 = vsel %vm1007, %v1009, %v1005
        %v1011 = vmul.f32 1.0, %v1010
        %v1012 = vld [vmem:[%s14] sm:$0xff]
        %vm1013 = vcmask 64512
        %v1015 = vsel %vm1013, %v966, 0
        %v1018 = vsel %vm1013, %v981, 0
        %v1021 = vsel %vm1013, %v996, 0
        %v1024 = vsel %vm1013, %v1011, 0
        %1026 = vmatpush.msra.mxu0 0.0
        %1027 = vmatpush.msra.mxu0 0.0
        %1028 = vmatpush.msra.mxu0 0.0
        %1029 = vmatpush.msra.mxu0 0.0
        %1030 = vmatpush.msra.mxu0 0.0
        %1031 = vmatpush.msra.mxu0 0.0
        %1032 = vmatpush.msra.mxu0 0.0
        %1033 = vmatpush.msra.mxu0 0.0
        %1034 = vmatpush.msra.mxu0 0.0
        %1035 = vmatpush.msra.mxu0 0.0
        %1036 = vmatpush.msra.mxu0 0.0
        %1037 = vmatpush.msra.mxu0 0.0
        %1038 = vmatpush.msra.mxu0 0.0
        %1039 = vmatpush.msra.mxu0 0.0
        %1040 = vmatpush.msra.mxu0 0.0
        %1041 = vmatpush.msra.mxu0 %v1012
        %1042 = vmatmul.f32.gmra.mxu0 %v1015
        %v1043 = vpop.f32.mrf.mxu0
        %v1044 = vadd.f32 0.0, %v1043
        %1045 = vmatmul.f32.gmra.mxu0 %v1018
        %v1046 = vpop.f32.mrf.mxu0
        %v1047 = vadd.f32 0.0, %v1046
        %1048 = vmatmul.f32.gmra.mxu0 %v1021
        %v1049 = vpop.f32.mrf.mxu0
        %v1050 = vadd.f32 0.0, %v1049
        %1051 = vmatmul.f32.gmra.mxu0 %v1024
        %v1052 = vpop.f32.mrf.mxu0
        %v1053 = vadd.f32 0.0, %v1052
        %1054 = vdwg.mxu0
        %v1055 = vmul.f32 %v776, %v1044
        %v1056 = vmul.f32 %v778, %v1047
        %v1057 = vmul.f32 %v781, %v1050
        %v1058 = vmul.f32 %v783, %v1053
        %v1059 = vld [vmem:[%s15] sm:$0xf]
        %v1060 = vld [vmem:[%s15 + $0x4] sm:$0xf]
        %v1061 = vld [vmem:[%s15 + $0x8] sm:$0xf]
        %v1062 = vld [vmem:[%s15 + $0xc] sm:$0xf]
        %v1067 = vunpack.c.l.b16 %v1059
        %v1068 = vunpack.c.l.b16 %v1060
        %v1069 = vunpack.c.l.b16 %v1061
        %v1070 = vunpack.c.l.b16 %v1062
        %v1071 = vpack.c.b16 %v1068, %v1067
        %v1072 = vpack.c.b16 %v1070, %v1069
        %vm1073 = vcmask 130048
        %v1075 = vsel %vm1073, %v1071, 0
        %v1078 = vsel %vm1073, %v1072, 0
        %1080 = vmatpush.bf16.msra.mxu0 0
        %1081 = vmatpush.bf16.msra.mxu0 0
        %1082 = vmatpush.bf16.msra.mxu0 0
        %1083 = vmatpush.bf16.msra.mxu0 0
        %1084 = vmatpush.bf16.msra.mxu0 0
        %1085 = vmatpush.bf16.msra.mxu0 0
        %1086 = vmatpush.bf16.msra.mxu0 0
        %1087 = vmatpush.bf16.msra.mxu0 %v617
        %1088 = vmatmul.bf16.gmra.mxu0 %v1075
        %v1089 = vpop.f32.mrf.mxu0
        %v1090 = vadd.f32 0.0, %v1089
        %v1091 = vpop.f32.mrf.mxu0
        %v1092 = vadd.f32 0.0, %v1091
        %1093 = vmatmul.bf16.gmra.mxu0 %v1078
        %v1094 = vpop.f32.mrf.mxu0
        %v1095 = vadd.f32 0.0, %v1094
        %v1096 = vpop.f32.mrf.mxu0
        %v1097 = vadd.f32 0.0, %v1096
        %1098 = vdwg.mxu0
        %v1099 = vadd.f32 %v1055, %v1090
        %v1100 = vadd.f32 %v1056, %v1092
        %v1101 = vadd.f32 %v1057, %v1095
        %v1102 = vadd.f32 %v1058, %v1097
        %1103 = vst [vmem:[%s558] sm:$0xff] %v1099
        %1104 = vst [vmem:[%s558 + $0x8] sm:$0xff] %v1100
        %1105 = vst [vmem:[%s558 + $0x10] sm:$0xff] %v1101
        %1106 = vst [vmem:[%s558 + $0x18] sm:$0xff] %v1102
        %s1107 = sand.u32 %s379, 1
        %s1108 = scalar_lea.sflag [#allocation4], %s1107
        %s1109 = sand.u32 %s379, 1
        %s1110 = smul.addr %s1109, 32
        %s1111 = scalar_lea.vmem [#allocation3], %s1110
        // Predicated region
        $region123: #{tpu_custom_call.1} parent=117 // pred_check
          %p1112 = pneg %p389
        $region124: #{tpu_custom_call.1} parent=117 // pred_check_branch
          %1114 = sbr.rel (%p1112) target = $region126
        $region125: #{tpu_custom_call.1} parent=117 // pred_region
          %1116 = vsyncadd %s1108, 0
          %s1117 = smul.addr %s30, 8
          %s1118 = scalar_lea.hbm %s16, %s1117
          %s1119 = sshll.u32 %s1111, 4
          %s1120 = int_to_ptr.vmem [resolvable:$true] %s1119
          %s1121 = sshll.u32 %s1118, 4
          %s1122 = int_to_ptr.hbm [resolvable:$true] %s1121
          %1127 = dma.vmem_to_hbm [thread:$0]  %s1120, 512, %s1122, %s1108, 128, 256, 8
        $region126: #{tpu_custom_call.1} parent=117 // pred_fallthru
          _
      $region118: #{tpu_custom_call.1} parent=5 // pred_fallthru
        _
      %p1128 = scmp.le.s32.totalorder 2, %s25
      // Predicated region
      $region127: #{tpu_custom_call.1} parent=5 // pred_check
        %p1129 = pneg %p1128
      $region128: #{tpu_custom_call.1} parent=5 // pred_check_branch
        %1131 = sbr.rel (%p1129) target = $region130
      $region129: #{tpu_custom_call.1} parent=5 // pred_region
        %s1132 = ssub.s32 %s25, 2
        // Predicated region
        $region131: #{tpu_custom_call.1} parent=129 // pred_check
          %p1133 = pneg %p395
        $region132: #{tpu_custom_call.1} parent=129 // pred_check_branch
          %1135 = sbr.rel (%p1133) target = $region134
        $region133: #{tpu_custom_call.1} parent=129 // pred_region
          %s1136 = sand.u32 %s380, 1
          %s1137 = scalar_lea.sflag [#allocation4], %s1136
          %s1138 = sand.u32 %s380, 1
          %s1139 = smul.addr %s1138, 32
          %s1140 = scalar_lea.vmem [#allocation3], %s1139
          %1142 = dma.done %s1137, 512
        $region134: #{tpu_custom_call.1} parent=129 // pred_fallthru
          _
      $region130: #{tpu_custom_call.1} parent=5 // pred_fallthru
        _
    $region6: #{tpu_custom_call.1} parent=1 // loop_footer
      %s29 = sadd.s32 1, %s25
    $region7: #{tpu_custom_call.1} parent=1 // loop_footer_branch
      %24 = sbr.rel target = $region3
    $region8: #{tpu_custom_call.1} parent=1 // loop_exit
      _
    %1143 = vsyncpa [#allocation4], 1
    %s1144 = scalar_lea.sflag [#allocation4], 1
    %1145 = vsyncpa %s1144, 1

</llo_original>
